<compile_context>
chip_gen: v6e
topology: v6e:2x2x1
jax: 0.10.0
libtpu: 0.0.40
codegen_flags: <defaults>
</compile_context>

<pallas_src>
import math

import jax
import jax.numpy as jnp
from jax.experimental import pallas as pl
from jax.experimental.pallas import tpu as pltpu


# ---------------------------------------------------------------------------
# Pallas kernel: full GraphModule forward on (N, H) node features.
#   feat_ref : (N, H)      node features
#   adj_ref  : (N, N)      raw adjacency, A[dst, src] (self-loops included)
#   w_ref    : (5H, 2H)    packed weights:
#                 rows 0:H   , cols 0:2H -> [w1a | w1b]            (H , 2H)
#                 rows H:3H  , cols 0:H  -> blockdiag(w2a, w2b)    (2H, H )
#                 rows 3H:4H , cols 0:H  -> wf1                    (H , H )
#                 rows 4H:5H , cols 0:H  -> wf2                    (H , H )
#   b_ref    : (8, 2H)     packed bias-like rows:
#                 row 0 -> [b1a | b1b] (2H)   row 1 -> [b2a | b2b] (H)
#                 row 2 -> gamma (H)          row 3 -> beta (H)
#                 row 4 -> bf1 (H)            row 5 -> bf2 (H)
# ---------------------------------------------------------------------------
def _graph_module_kernel(feat_ref, adj_ref, w_ref, b_ref, out_ref):
    H = feat_ref.shape[1]

    feat = feat_ref[...].astype(jnp.float32)   # (N, H)
    adj = adj_ref[...].astype(jnp.float32)     # (N, N)

    # --- DGL GraphConv norm='both', degrees clamped to >= 1 -----------------
    deg_out = jnp.sum(adj, axis=0, keepdims=True)            # (1, N) src out-degree
    deg_in = jnp.sum(adj, axis=1, keepdims=True)             # (N, 1) dst in-degree
    r_out = jax.lax.rsqrt(jnp.maximum(deg_out, 1.0))          # (1, N)
    r_in = jax.lax.rsqrt(jnp.maximum(deg_in, 1.0))            # (N, 1)
    adj_n = adj * r_out        # column-scaled adjacency, built once in VMEM and reused

    # --- packed parameters (static, aligned ref slices / value slices) ------
    w1 = w_ref[0:H, :]                 # (H, 2H)  = [w1a | w1b]
    w2 = w_ref[H:3 * H, 0:H]           # (2H, H)  = blockdiag(w2a, w2b)
    wf1 = w_ref[3 * H:4 * H, 0:H]      # (H, H)
    wf2 = w_ref[4 * H:5 * H, 0:H]      # (H, H)

    b = b_ref[...].astype(jnp.float32)  # (8, 2H) -- single tiny load, slice the value
    b1 = b[0:1, :]                      # (1, 2H)
    b2 = b[1:2, 0:H]                    # (1, H)
    gamma = b[2:3, 0:H]
    beta = b[3:4, 0:H]
    bf1 = b[4:5, 0:H]
    bf2 = b[5:6, 0:H]

    # --- fused two-branch GCN ------------------------------------------------
    # GraphConv 1 (shared aggregation + fused branch weights):
    #   h1 = relu( D_in^-1/2 A D_out^-1/2 X [w1a|w1b] + [b1a|b1b] )
    agg0 = jnp.dot(adj_n, feat, preferred_element_type=jnp.float32)          # (N, H)
    h1 = r_in * jnp.dot(agg0, w1, preferred_element_type=jnp.float32) + b1   # (N, 2H)
    h1 = jnp.maximum(h1, 0.0)        # ReLU; Dropout = eval identity
    # GraphConv 2 (block-diag weights replace the explicit concat):
    agg1 = jnp.dot(adj_n, h1, preferred_element_type=jnp.float32)            # (N, 2H)
    hc = r_in * jnp.dot(agg1, w2, preferred_element_type=jnp.float32) + b2   # (N, H)

    # --- LayerNorm (eps=1e-5, affine) + residual ----------------------------
    mean = jnp.mean(hc, axis=-1, keepdims=True)
    var = jnp.mean((hc - mean) * (hc - mean), axis=-1, keepdims=True)
    ln = (hc - mean) * jax.lax.rsqrt(var + 1e-5) * gamma + beta
    h2 = feat + ln

    # --- feed_forward: Linear -> ReLU -> Dropout(identity) -> Linear --------
    ff = jnp.dot(h2, wf1, preferred_element_type=jnp.float32) + bf1
    ff = jnp.maximum(ff, 0.0)
    ff = jnp.dot(ff, wf2, preferred_element_type=jnp.float32) + bf2

    # residual 2
    out_ref[...] = (h2 + ff).astype(out_ref.dtype)


# ---------------------------------------------------------------------------
# Wrapper: everything around the kernel lives in one jit region.
# ---------------------------------------------------------------------------
@jax.jit
def _encoder_jit(embedded, adjacency, wslab, bslab):
    S, B, H = embedded.shape
    N = S * B

    # Matches PyTorch: problem_output is taken from the *pre-GCN* input.
    problem_output = embedded[:, 0]                       # (S, H)

    feat = embedded.reshape(N, H).astype(jnp.float32)
    vmem = pltpu.MemorySpace.VMEM
    out = pl.pallas_call(
        _graph_module_kernel,
        out_shape=jax.ShapeDtypeStruct((N, H), jnp.float32),
        in_specs=[pl.BlockSpec(memory_space=vmem)] * 4,
        out_specs=pl.BlockSpec(memory_space=vmem),
    )(feat, adjacency, wslab, bslab)

    pade_outputs = jnp.transpose(out.reshape(S, B, H), (1, 0, 2))  # (B, S, H)
    return pade_outputs, problem_output


def encoder_with_gcn(embedded, input_lengths, orig_idx, adjacency, wslab, bslab):
    del input_lengths, orig_idx   # unused by the reference forward
    return _encoder_jit(embedded, adjacency, wslab, bslab)


# ---------------------------------------------------------------------------
# Parameters: deterministic init + one-time packing into two slabs.
# ---------------------------------------------------------------------------
def init_params(key, hidden):
    H, H2 = hidden, hidden // 2
    ks = jax.random.split(key, 8)

    def glorot(k, shape):
        limit = math.sqrt(6.0 / (shape[0] + shape[1]))
        return jax.random.uniform(k, shape, jnp.float32, -limit, limit)

    return {
        # branch a: GraphConv(H,H), GraphConv(H,H//2)
        "w1a": glorot(ks[0], (H, H)),  "b1a": jnp.zeros((H,), jnp.float32),
        "w2a": glorot(ks[1], (H, H2)), "b2a": jnp.zeros((H2,), jnp.float32),
        # branch b
        "w1b": glorot(ks[2], (H, H)),  "b1b": jnp.zeros((H,), jnp.float32),
        "w2b": glorot(ks[3], (H, H2)), "b2b": jnp.zeros((H2,), jnp.float32),
        # LayerNorm(H)
        "gamma": jnp.ones((H,), jnp.float32),
        "beta": jnp.zeros((H,), jnp.float32),
        # feed_forward: Linear(H,H), Linear(H,H)
        "wf1": glorot(ks[4], (H, H)),
        "bf1": 0.01 * jax.random.normal(ks[5], (H,), jnp.float32),
        "wf2": glorot(ks[6], (H, H)),
        "bf2": 0.01 * jax.random.normal(ks[7], (H,), jnp.float32),
    }


def pack_params(params, H):
    """Pack 16 tiny arrays into a weight slab (5H,2H) and a bias slab (8,2H)."""
    H2 = H // 2
    w1 = jnp.concatenate([params["w1a"], params["w1b"]], axis=1)          # (H, 2H)
    w2 = jnp.zeros((2 * H, H), jnp.float32)
    w2 = w2.at[0:H, 0:H2].set(params["w2a"])
    w2 = w2.at[H:2 * H, H2:H].set(params["w2b"])                           # block-diag

    wslab = jnp.zeros((5 * H, 2 * H), jnp.float32)
    wslab = wslab.at[0:H, :].set(w1)
    wslab = wslab.at[H:3 * H, 0:H].set(w2)
    wslab = wslab.at[3 * H:4 * H, 0:H].set(params["wf1"])
    wslab = wslab.at[4 * H:5 * H, 0:H].set(params["wf2"])

    bslab = jnp.zeros((8, 2 * H), jnp.float32)
    bslab = bslab.at[0, :].set(jnp.concatenate([params["b1a"], params["b1b"]]))
    bslab = bslab.at[1, 0:H].set(jnp.concatenate([params["b2a"], params["b2b"]]))
    bslab = bslab.at[2, 0:H].set(params["gamma"])
    bslab = bslab.at[3, 0:H].set(params["beta"])
    bslab = bslab.at[4, 0:H].set(params["bf1"])
    bslab = bslab.at[5, 0:H].set(params["bf2"])
    return wslab, bslab


# ---------------------------------------------------------------------------
# Pure-JAX reference (un-fused, dense normalized adjacency) for verification.
# ---------------------------------------------------------------------------
def _reference(embedded, adj, params):
    S, B, H = embedded.shape
    N = S * B
    feat = embedded.reshape(N, H)
    deg_out = jnp.clip(jnp.sum(adj, axis=0), 1.0, None)
    deg_in = jnp.clip(jnp.sum(adj, axis=1), 1.0, None)
    ahat = adj * (deg_in[:, None] ** -0.5) * (deg_out[None, :] ** -0.5)

    def conv(h, w, b):
        return jnp.dot(jnp.dot(ahat, h), w) + b

    def branch(w1, b1, w2, b2):
        h1 = jnp.maximum(conv(feat, w1, b1), 0.0)
        return conv(h1, w2, b2)

    hc = jnp.concatenate(
        [branch(params["w1a"], params["b1a"], params["w2a"], params["b2a"]),
         branch(params["w1b"], params["b1b"], params["w2b"], params["b2b"])],
        axis=-1)
    mean = hc.mean(-1, keepdims=True)
    var = ((hc - mean) ** 2).mean(-1, keepdims=True)
    ln = (hc - mean) / jnp.sqrt(var + 1e-5) * params["gamma"] + params["beta"]
    h2 = feat + ln
    ff = jnp.maximum(h2 @ params["wf1"] + params["bf1"], 0.0) @ params["wf2"] + params["bf2"]
    out = h2 + ff
    return jnp.transpose(out.reshape(S, B, H), (1, 0, 2)), embedded[:, 0]


if __name__ == "__main__":
    S, B, H = 8, 2, 32          # seq_len, batch, hidden_size
    N = S * B

    key = jax.random.PRNGKey(0)
    k_emb, k_adj, k_par = jax.random.split(key, 3)

    embedded = jax.random.normal(k_emb, (S, B, H), jnp.float32)
    input_lengths = jnp.full((B,), S, jnp.int32)     # unused by forward
    orig_idx = jnp.arange(B, dtype=jnp.int32)        # unused by forward

    # batch_graph as dense adjacency A[dst, src] with self-loops
    adj = (jax.random.uniform(k_adj, (N, N)) < 0.3).astype(jnp.float32)
    adj = jnp.maximum(adj, jnp.eye(N, dtype=jnp.float32))

    params = init_params(k_par, H)
    wslab, bslab = pack_params(params, H)

    pade_outputs, problem_output = encoder_with_gcn(
        embedded, input_lengths, orig_idx, adj, wslab, bslab)
    jax.block_until_ready((pade_outputs, problem_output))

    assert pade_outputs.shape == (B, S, H)
    assert problem_output.shape == (S, H)
    assert jnp.all(jnp.isfinite(pade_outputs)) and jnp.all(jnp.isfinite(problem_output))

    # numerical check of the fused kernel against the un-fused reference
    ref_out, ref_prob = _reference(embedded, adj, params)
    assert jnp.allclose(pade_outputs, ref_out, atol=1e-4, rtol=1e-4)
    assert jnp.allclose(problem_output, ref_prob, atol=1e-6, rtol=1e-6)

    print("KERNEL_OK")
</pallas_src>

<mosaic_0001>
module attributes {stable_mosaic.version = 11 : i64} {
  func.func @_graph_module_kernel(%arg0: memref<16x32xf32, #tpu.memory_space<vmem>>, %arg1: memref<16x16xf32, #tpu.memory_space<vmem>>, %arg2: memref<160x64xf32, #tpu.memory_space<vmem>>, %arg3: memref<8x64xf32, #tpu.memory_space<vmem>>, %arg4: memref<16x32xf32, #tpu.memory_space<vmem>>) attributes {dimension_semantics = [], scalar_prefetch = 0 : i64, scratch_operands = 0 : i64, tpu.core_type = #tpu.core_type<tc>} {
    %c0 = arith.constant 0 : index
    %c0_0 = arith.constant 0 : index
    %0 = vector.load %arg0[%c0, %c0_0] : memref<16x32xf32, #tpu.memory_space<vmem>>, vector<16x32xf32>
    %c0_1 = arith.constant 0 : index
    %c0_2 = arith.constant 0 : index
    %1 = vector.load %arg1[%c0_1, %c0_2] : memref<16x16xf32, #tpu.memory_space<vmem>>, vector<16x16xf32>
    %cst = arith.constant dense<0.000000e+00> : vector<16xf32>
    %2 = vector.multi_reduction <add>, %1, %cst [0] : vector<16x16xf32> to vector<16xf32>
    %3 = vector.shape_cast %2 : vector<16xf32> to vector<1x16xf32>
    %cst_3 = arith.constant dense<0.000000e+00> : vector<16xf32>
    %4 = vector.multi_reduction <add>, %1, %cst_3 [1] : vector<16x16xf32> to vector<16xf32>
    %5 = vector.shape_cast %4 : vector<16xf32> to vector<16x1xf32>
    %cst_4 = arith.constant 1.000000e+00 : f32
    %6 = vector.broadcast %cst_4 : f32 to vector<1x16xf32>
    %7 = arith.maximumf %3, %6 : vector<1x16xf32>
    %8 = math.rsqrt %7 : vector<1x16xf32>
    %cst_5 = arith.constant 1.000000e+00 : f32
    %9 = vector.broadcast %cst_5 : f32 to vector<16x1xf32>
    %10 = arith.maximumf %5, %9 : vector<16x1xf32>
    %11 = math.rsqrt %10 : vector<16x1xf32>
    %12 = vector.broadcast %8 : vector<1x16xf32> to vector<16x16xf32>
    %13 = arith.mulf %1, %12 : vector<16x16xf32>
    %c0_6 = arith.constant 0 : index
    %c0_7 = arith.constant 0 : index
    %14 = vector.load %arg2[%c0_6, %c0_7] : memref<160x64xf32, #tpu.memory_space<vmem>>, vector<32x64xf32>
    %c32 = arith.constant 32 : index
    %c0_8 = arith.constant 0 : index
    %15 = vector.load %arg2[%c32, %c0_8] : memref<160x64xf32, #tpu.memory_space<vmem>>, vector<64x32xf32>
    %c96 = arith.constant 96 : index
    %c0_9 = arith.constant 0 : index
    %16 = vector.load %arg2[%c96, %c0_9] : memref<160x64xf32, #tpu.memory_space<vmem>>, vector<32x32xf32>
    %c128 = arith.constant 128 : index
    %c0_10 = arith.constant 0 : index
    %17 = vector.load %arg2[%c128, %c0_10] : memref<160x64xf32, #tpu.memory_space<vmem>>, vector<32x32xf32>
    %c0_11 = arith.constant 0 : index
    %c0_12 = arith.constant 0 : index
    %18 = vector.load %arg3[%c0_11, %c0_12] : memref<8x64xf32, #tpu.memory_space<vmem>>, vector<8x64xf32>
    %19 = vector.extract_strided_slice %18 {offsets = [0, 0], sizes = [1, 64], strides = [1, 1]} : vector<8x64xf32> to vector<1x64xf32>
    %20 = vector.extract_strided_slice %18 {offsets = [1, 0], sizes = [1, 32], strides = [1, 1]} : vector<8x64xf32> to vector<1x32xf32>
    %21 = vector.extract_strided_slice %18 {offsets = [2, 0], sizes = [1, 32], strides = [1, 1]} : vector<8x64xf32> to vector<1x32xf32>
    %22 = vector.extract_strided_slice %18 {offsets = [3, 0], sizes = [1, 32], strides = [1, 1]} : vector<8x64xf32> to vector<1x32xf32>
    %23 = vector.extract_strided_slice %18 {offsets = [4, 0], sizes = [1, 32], strides = [1, 1]} : vector<8x64xf32> to vector<1x32xf32>
    %24 = vector.extract_strided_slice %18 {offsets = [5, 0], sizes = [1, 32], strides = [1, 1]} : vector<8x64xf32> to vector<1x32xf32>
    %cst_13 = arith.constant dense<0.000000e+00> : vector<16x32xf32>
    %25 = tpu.matmul %13, %0, %cst_13 {dimension_numbers = #tpu.dot_dimension_numbers<[1], [0], [0], [1], [0, 0, 1, 1], [], []>} : vector<16x16xf32>, vector<16x32xf32>, vector<16x32xf32> -> vector<16x32xf32>
    %cst_14 = arith.constant dense<0.000000e+00> : vector<16x64xf32>
    %26 = tpu.matmul %25, %14, %cst_14 {dimension_numbers = #tpu.dot_dimension_numbers<[1], [0], [0], [1], [0, 0, 1, 1], [], []>} : vector<16x32xf32>, vector<32x64xf32>, vector<16x64xf32> -> vector<16x64xf32>
    %27 = vector.broadcast %11 : vector<16x1xf32> to vector<16x64xf32>
    %28 = arith.mulf %27, %26 : vector<16x64xf32>
    %29 = vector.broadcast %19 : vector<1x64xf32> to vector<16x64xf32>
    %30 = arith.addf %28, %29 : vector<16x64xf32>
    %cst_15 = arith.constant 0.000000e+00 : f32
    %31 = vector.broadcast %cst_15 : f32 to vector<16x64xf32>
    %32 = arith.maximumf %30, %31 : vector<16x64xf32>
    %cst_16 = arith.constant dense<0.000000e+00> : vector<16x64xf32>
    %33 = tpu.matmul %13, %32, %cst_16 {dimension_numbers = #tpu.dot_dimension_numbers<[1], [0], [0], [1], [0, 0, 1, 1], [], []>} : vector<16x16xf32>, vector<16x64xf32>, vector<16x64xf32> -> vector<16x64xf32>
    %cst_17 = arith.constant dense<0.000000e+00> : vector<16x32xf32>
    %34 = tpu.matmul %33, %15, %cst_17 {dimension_numbers = #tpu.dot_dimension_numbers<[1], [0], [0], [1], [0, 0, 1, 1], [], []>} : vector<16x64xf32>, vector<64x32xf32>, vector<16x32xf32> -> vector<16x32xf32>
    %35 = vector.broadcast %11 : vector<16x1xf32> to vector<16x32xf32>
    %36 = arith.mulf %35, %34 : vector<16x32xf32>
    %37 = vector.broadcast %20 : vector<1x32xf32> to vector<16x32xf32>
    %38 = arith.addf %36, %37 : vector<16x32xf32>
    %cst_18 = arith.constant dense<0.000000e+00> : vector<16xf32>
    %39 = vector.multi_reduction <add>, %38, %cst_18 [1] : vector<16x32xf32> to vector<16xf32>
    %40 = vector.shape_cast %39 : vector<16xf32> to vector<16x1xf32>
    %cst_19 = arith.constant 3.200000e+01 : f32
    %41 = vector.broadcast %cst_19 : f32 to vector<16x1xf32>
    %42 = arith.divf %40, %41 : vector<16x1xf32>
    %43 = vector.broadcast %42 : vector<16x1xf32> to vector<16x32xf32>
    %44 = arith.subf %38, %43 : vector<16x32xf32>
    %45 = vector.broadcast %42 : vector<16x1xf32> to vector<16x32xf32>
    %46 = arith.subf %38, %45 : vector<16x32xf32>
    %47 = arith.mulf %44, %46 : vector<16x32xf32>
    %cst_20 = arith.constant dense<0.000000e+00> : vector<16xf32>
    %48 = vector.multi_reduction <add>, %47, %cst_20 [1] : vector<16x32xf32> to vector<16xf32>
    %49 = vector.shape_cast %48 : vector<16xf32> to vector<16x1xf32>
    %cst_21 = arith.constant 3.200000e+01 : f32
    %50 = vector.broadcast %cst_21 : f32 to vector<16x1xf32>
    %51 = arith.divf %49, %50 : vector<16x1xf32>
    %52 = vector.broadcast %42 : vector<16x1xf32> to vector<16x32xf32>
    %53 = arith.subf %38, %52 : vector<16x32xf32>
    %cst_22 = arith.constant 9.99999974E-6 : f32
    %54 = vector.broadcast %cst_22 : f32 to vector<16x1xf32>
    %55 = arith.addf %51, %54 : vector<16x1xf32>
    %56 = math.rsqrt %55 : vector<16x1xf32>
    %57 = vector.broadcast %56 : vector<16x1xf32> to vector<16x32xf32>
    %58 = arith.mulf %53, %57 : vector<16x32xf32>
    %59 = vector.broadcast %21 : vector<1x32xf32> to vector<16x32xf32>
    %60 = arith.mulf %58, %59 : vector<16x32xf32>
    %61 = vector.broadcast %22 : vector<1x32xf32> to vector<16x32xf32>
    %62 = arith.addf %60, %61 : vector<16x32xf32>
    %63 = arith.addf %0, %62 : vector<16x32xf32>
    %cst_23 = arith.constant dense<0.000000e+00> : vector<16x32xf32>
    %64 = tpu.matmul %63, %16, %cst_23 {dimension_numbers = #tpu.dot_dimension_numbers<[1], [0], [0], [1], [0, 0, 1, 1], [], []>} : vector<16x32xf32>, vector<32x32xf32>, vector<16x32xf32> -> vector<16x32xf32>
    %65 = vector.broadcast %23 : vector<1x32xf32> to vector<16x32xf32>
    %66 = arith.addf %64, %65 : vector<16x32xf32>
    %cst_24 = arith.constant 0.000000e+00 : f32
    %67 = vector.broadcast %cst_24 : f32 to vector<16x32xf32>
    %68 = arith.maximumf %66, %67 : vector<16x32xf32>
    %cst_25 = arith.constant dense<0.000000e+00> : vector<16x32xf32>
    %69 = tpu.matmul %68, %17, %cst_25 {dimension_numbers = #tpu.dot_dimension_numbers<[1], [0], [0], [1], [0, 0, 1, 1], [], []>} : vector<16x32xf32>, vector<32x32xf32>, vector<16x32xf32> -> vector<16x32xf32>
    %70 = vector.broadcast %24 : vector<1x32xf32> to vector<16x32xf32>
    %71 = arith.addf %69, %70 : vector<16x32xf32>
    %72 = arith.addf %63, %71 : vector<16x32xf32>
    %c0_26 = arith.constant 0 : index
    %c0_27 = arith.constant 0 : index
    %73 = vector.load %arg4[%c0_26, %c0_27] : memref<16x32xf32, #tpu.memory_space<vmem>>, vector<16x32xf32>
    tpu.vector_store %arg4[%c0_26, %c0_27], %72 {strides = array<i32>} : memref<16x32xf32, #tpu.memory_space<vmem>>, vector<16x32xf32>,
    return
  }
}

</mosaic_0001>

<llo_original>
// kernel: _encoder_jit.1
$region0: #{_encoder_jit.1}
  #allocation0 [shape = 'u32[]', space=smem, size = 0x4, offset = 0x4, fixed_abs, tag = 'smem constant byte address 0x4 - core index']
  #allocation1 [shape = 'u32[144,128]{1,0:T(1,128)}', space=vmem, size = 0x12000, scoped, tag = 'internal scratch']
  %s0 = inlined_call_operand.vmem [shape: f32[16,32], index: 0, kind: input, shape index: {}]
  %s1 = inlined_call_operand.vmem [shape: f32[16,16], index: 1, kind: input, shape index: {}]
  %s2 = inlined_call_operand.vmem [shape: f32[160,64], index: 2, kind: input, shape index: {}]
  %s3 = inlined_call_operand.vmem [shape: f32[8,64], index: 3, kind: input, shape index: {}]
  %s4 = inlined_call_operand.vmem [shape: f32[16,32], index: 4, kind: output, shape index: {}]
  %s5 = sld [smem:[#allocation0]]
  $region26: #{_encoder_jit.1} parent=0
    _
  %s7 = ssub.s32 1, %s5
  %s8 = scalar_select 0, %s7, %s5
  // Predicated region
  $region2: #{_encoder_jit.1} parent=0 // pred_check
    _
  $region3: #{_encoder_jit.1} parent=0 // pred_check_branch
    %10 = sbr.rel (0) target = $region5
  $region4: #{_encoder_jit.1} parent=0 // pred_region
    _
  $region5: #{_encoder_jit.1} parent=0 // pred_fallthru
    _
  // Predicated region
  $region6: #{_encoder_jit.1} parent=0 // pred_check
    _
  $region7: #{_encoder_jit.1} parent=0 // pred_check_branch
    %12 = sbr.rel (0) target = $region9
  $region8: #{_encoder_jit.1} parent=0 // pred_region
    _
  $region9: #{_encoder_jit.1} parent=0 // pred_fallthru
    _
  // Predicated region
  $region10: #{_encoder_jit.1} parent=0 // pred_check
    _
  $region11: #{_encoder_jit.1} parent=0 // pred_check_branch
    %14 = sbr.rel (0) target = $region13
  $region12: #{_encoder_jit.1} parent=0 // pred_region
    _
  $region13: #{_encoder_jit.1} parent=0 // pred_fallthru
    _
  // Predicated region
  $region14: #{_encoder_jit.1} parent=0 // pred_check
    _
  $region15: #{_encoder_jit.1} parent=0 // pred_check_branch
    %16 = sbr.rel (0) target = $region17
  $region16: #{_encoder_jit.1} parent=0 // pred_region
    _
  $region17: #{_encoder_jit.1} parent=0 // pred_fallthru
    _
  %v17 = vld [vmem:[%s0] sm:$0xff]
  %v18 = vld [vmem:[%s0 + $0x8] sm:$0xff]
  %v19 = vld [vmem:[%s1] sm:$0xff]
  %v20 = vld [vmem:[%s1 + $0x8] sm:$0xff]
  %vm21 = vcmask 130048
  %v22 = vsel %vm21, %v19, 0.0
  %v23 = vsel %vm21, %v20, 0.0
  %v24 = vadd.f32 %v22, %v23
  %v25 = vrot.slane %v24, 4
  %v26 = vadd.f32 %v24, %v25
  %v27 = vrot.slane %v26, 2
  %v28 = vadd.f32 %v26, %v27
  %v29 = vrot.slane %v28, 1
  %v30 = vadd.f32 %v28, %v29
  %31 = vadd.xlane.f32.xlu0 %v22
  %v32 = vpop.xlane.xlu0 %31
  %33 = vadd.xlane.f32.xlu0 %v23
  %v34 = vpop.xlane.xlu0 %33
  %v35 = vmax.f32 %v30, 1.0
  %v36 = vrsqrt.pop %v35
  %v37 = vmax.f32 %v32, 1.0
  %v38 = vmax.f32 %v34, 1.0
  %v39 = vrsqrt.pop %v37
  %v40 = vrsqrt.pop %v38
  %v41 = vmul.f32 %v19, %v36
  %v42 = vmul.f32 %v20, %v36
  %v43 = vld [vmem:[%s2] sm:$0xff]
  %v44 = vld [vmem:[%s2 + $0x8] sm:$0xff]
  %v45 = vld [vmem:[%s2 + $0x10] sm:$0xff]
  %v46 = vld [vmem:[%s2 + $0x18] sm:$0xff]
  %v47 = vld [vmem:[%s2 + $0x20] sm:$0xff]
  %v48 = vld [vmem:[%s2 + $0x28] sm:$0xff]
  %v49 = vld [vmem:[%s2 + $0x30] sm:$0xff]
  %v50 = vld [vmem:[%s2 + $0x38] sm:$0xff]
  %v51 = vld [vmem:[%s2 + $0x40] sm:$0xff]
  %v52 = vld [vmem:[%s2 + $0x48] sm:$0xff]
  %v53 = vld [vmem:[%s2 + $0x50] sm:$0xff]
  %v54 = vld [vmem:[%s2 + $0x58] sm:$0xff]
  %v55 = vld [vmem:[%s2 + $0x60] sm:$0xff]
  %v56 = vld [vmem:[%s2 + $0x68] sm:$0xff]
  %v57 = vld [vmem:[%s2 + $0x70] sm:$0xff]
  %v58 = vld [vmem:[%s2 + $0x78] sm:$0xff]
  %v59 = vld [vmem:[%s2 + $0x80] sm:$0xff]
  %v60 = vld [vmem:[%s2 + $0x88] sm:$0xff]
  %v61 = vld [vmem:[%s2 + $0x90] sm:$0xff]
  %v62 = vld [vmem:[%s2 + $0x98] sm:$0xff]
  %v63 = vld [vmem:[%s3] sm:$0xff]
  %v65 = vsel %vm21, %v41, 0
  %v68 = vsel %vm21, %v42, 0
  %70 = vmatprep.subr.mxu0 0.0
  %71 = vmatpush1.msra.mxu0 0.0
  %72 = vmatprep.subr.mxu0 0.0
  %73 = vmatpush1.msra.mxu0 0.0
  %74 = vmatprep.subr.mxu0 0.0
  %75 = vmatpush1.msra.mxu0 0.0
  %76 = vmatprep.subr.mxu0 0.0
  %77 = vmatpush1.msra.mxu0 0.0
  %78 = vmatprep.subr.mxu0 0.0
  %79 = vmatpush1.msra.mxu0 0.0
  %80 = vmatprep.subr.mxu0 0.0
  %81 = vmatpush1.msra.mxu0 0.0
  %82 = vmatprep.subr.mxu0 0.0
  %83 = vmatpush1.msra.mxu0 0.0
  %84 = vmatprep.subr.mxu0 0.0
  %85 = vmatpush1.msra.mxu0 0.0
  %86 = vmatprep.subr.mxu0 0.0
  %87 = vmatpush1.msra.mxu0 0.0
  %88 = vmatprep.subr.mxu0 0.0
  %89 = vmatpush1.msra.mxu0 0.0
  %90 = vmatprep.subr.mxu0 0.0
  %91 = vmatpush1.msra.mxu0 0.0
  %92 = vmatprep.subr.mxu0 0.0
  %93 = vmatpush1.msra.mxu0 0.0
  %94 = vmatprep.subr.mxu0 0.0
  %95 = vmatpush1.msra.mxu0 0.0
  %96 = vmatprep.subr.mxu0 0.0
  %97 = vmatpush1.msra.mxu0 0.0
  %98 = vmatprep.subr.mxu0 0.0
  %99 = vmatpush1.msra.mxu0 %v18
  %100 = vmatprep.subr.mxu0 0.0
  %101 = vmatpush1.msra.mxu0 %v17
  %102 = vmatprep.subr.mxu0 0.0
  %103 = vmatpush2.msra.mxu0 0.0
  %104 = vmatprep.subr.mxu0 0.0
  %105 = vmatpush2.msra.mxu0 0.0
  %106 = vmatprep.subr.mxu0 0.0
  %107 = vmatpush2.msra.mxu0 0.0
  %108 = vmatprep.subr.mxu0 0.0
  %109 = vmatpush2.msra.mxu0 0.0
  %110 = vmatprep.subr.mxu0 0.0
  %111 = vmatpush2.msra.mxu0 0.0
  %112 = vmatprep.subr.mxu0 0.0
  %113 = vmatpush2.msra.mxu0 0.0
  %114 = vmatprep.subr.mxu0 0.0
  %115 = vmatpush2.msra.mxu0 0.0
  %116 = vmatprep.subr.mxu0 0.0
  %117 = vmatpush2.msra.mxu0 0.0
  %118 = vmatprep.subr.mxu0 0.0
  %119 = vmatpush2.msra.mxu0 0.0
  %120 = vmatprep.subr.mxu0 0.0
  %121 = vmatpush2.msra.mxu0 0.0
  %122 = vmatprep.subr.mxu0 0.0
  %123 = vmatpush2.msra.mxu0 0.0
  %124 = vmatprep.subr.mxu0 0.0
  %125 = vmatpush2.msra.mxu0 0.0
  %126 = vmatprep.subr.mxu0 0.0
  %127 = vmatpush2.msra.mxu0 0.0
  %128 = vmatprep.subr.mxu0 0.0
  %129 = vmatpush2.msra.mxu0 0.0
  %130 = vmatprep.subr.mxu0 0.0
  %131 = vmatpush2.msra.mxu0 0.0
  %132 = vmatprep.subr.mxu0 0.0
  %133 = vmatpush2.msra.mxu0 0.0
  %134 = vmatprep.mubr.f32.mxu0 0.0
  %135 = vmatmul.mubr.f32.gmra.mxu0 %v65
  %v136 = vpop.f32.mrf.mxu0
  %v137 = vadd.f32 0.0, %v136
  %v138 = vpop.f32.mrf.mxu0
  %139 = vmatprep.mubr.f32.mxu0 0.0
  %140 = vmatmul.mubr.f32.gmra.mxu0 %v68
  %v141 = vpop.f32.mrf.mxu0
  %v142 = vadd.f32 0.0, %v141
  %v143 = vpop.f32.mrf.mxu0
  %144 = vdwg.mxu0
  %vm145 = vcmask 261120
  %v147 = vsel %vm145, %v137, 0
  %v150 = vsel %vm145, %v142, 0
  %152 = vmatprep.subr.mxu0 0.0
  %153 = vmatpush1.msra.mxu0 0.0
  %154 = vmatprep.subr.mxu0 0.0
  %155 = vmatpush1.msra.mxu0 0.0
  %156 = vmatprep.subr.mxu0 0.0
  %157 = vmatpush1.msra.mxu0 0.0
  %158 = vmatprep.subr.mxu0 0.0
  %159 = vmatpush1.msra.mxu0 0.0
  %160 = vmatprep.subr.mxu0 0.0
  %161 = vmatpush1.msra.mxu0 0.0
  %162 = vmatprep.subr.mxu0 0.0
  %163 = vmatpush1.msra.mxu0 0.0
  %164 = vmatprep.subr.mxu0 0.0
  %165 = vmatpush1.msra.mxu0 0.0
  %166 = vmatprep.subr.mxu0 0.0
  %167 = vmatpush1.msra.mxu0 0.0
  %168 = vmatprep.subr.mxu0 0.0
  %169 = vmatpush1.msra.mxu0 0.0
  %170 = vmatprep.subr.mxu0 0.0
  %171 = vmatpush1.msra.mxu0 0.0
  %172 = vmatprep.subr.mxu0 0.0
  %173 = vmatpush1.msra.mxu0 0.0
  %174 = vmatprep.subr.mxu0 0.0
  %175 = vmatpush1.msra.mxu0 0.0
  %176 = vmatprep.subr.mxu0 0.0
  %177 = vmatpush1.msra.mxu0 %v46
  %178 = vmatprep.subr.mxu0 0.0
  %179 = vmatpush1.msra.mxu0 %v45
  %180 = vmatprep.subr.mxu0 0.0
  %181 = vmatpush1.msra.mxu0 %v44
  %182 = vmatprep.subr.mxu0 0.0
  %183 = vmatpush1.msra.mxu0 %v43
  %184 = vmatprep.subr.mxu0 0.0
  %185 = vmatpush2.msra.mxu0 0.0
  %186 = vmatprep.subr.mxu0 0.0
  %187 = vmatpush2.msra.mxu0 0.0
  %188 = vmatprep.subr.mxu0 0.0
  %189 = vmatpush2.msra.mxu0 0.0
  %190 = vmatprep.subr.mxu0 0.0
  %191 = vmatpush2.msra.mxu0 0.0
  %192 = vmatprep.subr.mxu0 0.0
  %193 = vmatpush2.msra.mxu0 0.0
  %194 = vmatprep.subr.mxu0 0.0
  %195 = vmatpush2.msra.mxu0 0.0
  %196 = vmatprep.subr.mxu0 0.0
  %197 = vmatpush2.msra.mxu0 0.0
  %198 = vmatprep.subr.mxu0 0.0
  %199 = vmatpush2.msra.mxu0 0.0
  %200 = vmatprep.subr.mxu0 0.0
  %201 = vmatpush2.msra.mxu0 0.0
  %202 = vmatprep.subr.mxu0 0.0
  %203 = vmatpush2.msra.mxu0 0.0
  %204 = vmatprep.subr.mxu0 0.0
  %205 = vmatpush2.msra.mxu0 0.0
  %206 = vmatprep.subr.mxu0 0.0
  %207 = vmatpush2.msra.mxu0 0.0
  %208 = vmatprep.subr.mxu0 0.0
  %209 = vmatpush2.msra.mxu0 0.0
  %210 = vmatprep.subr.mxu0 0.0
  %211 = vmatpush2.msra.mxu0 0.0
  %212 = vmatprep.subr.mxu0 0.0
  %213 = vmatpush2.msra.mxu0 0.0
  %214 = vmatprep.subr.mxu0 0.0
  %215 = vmatpush2.msra.mxu0 0.0
  %216 = vmatprep.mubr.f32.mxu0 0.0
  %217 = vmatmul.mubr.f32.gmra.mxu0 %v147
  %v218 = vpop.f32.mrf.mxu0
  %v219 = vadd.f32 0.0, %v218
  %v220 = vpop.f32.mrf.mxu0
  %221 = vmatprep.mubr.f32.mxu0 0.0
  %222 = vmatmul.mubr.f32.gmra.mxu0 %v150
  %v223 = vpop.f32.mrf.mxu0
  %v224 = vadd.f32 0.0, %v223
  %v225 = vpop.f32.mrf.mxu0
  %226 = vdwg.mxu0
  %v227 = vmul.f32 %v39, %v219
  %v228 = vmul.f32 %v40, %v224
  %v229 = vlaneseq
  %v230 = vshrl.u32 %v229, 7
  %v231 = vsub.s32 0, %v230
  %v232 = vrot.slane %v63, %v231
  %v233 = vadd.f32 %v227, %v232
  %v234 = vadd.f32 %v228, %v232
  %v235 = vmax.f32 %v233, 0.0
  %v236 = vmax.f32 %v234, 0.0
  %237 = vmatprep.subr.mxu0 0.0
  %238 = vmatpush1.msra.mxu0 0.0
  %239 = vmatprep.subr.mxu0 0.0
  %240 = vmatpush1.msra.mxu0 0.0
  %241 = vmatprep.subr.mxu0 0.0
  %242 = vmatpush1.msra.mxu0 0.0
  %243 = vmatprep.subr.mxu0 0.0
  %244 = vmatpush1.msra.mxu0 0.0
  %245 = vmatprep.subr.mxu0 0.0
  %246 = vmatpush1.msra.mxu0 0.0
  %247 = vmatprep.subr.mxu0 0.0
  %248 = vmatpush1.msra.mxu0 0.0
  %249 = vmatprep.subr.mxu0 0.0
  %250 = vmatpush1.msra.mxu0 0.0
  %251 = vmatprep.subr.mxu0 0.0
  %252 = vmatpush1.msra.mxu0 0.0
  %253 = vmatprep.subr.mxu0 0.0
  %254 = vmatpush1.msra.mxu0 0.0
  %255 = vmatprep.subr.mxu0 0.0
  %256 = vmatpush1.msra.mxu0 0.0
  %257 = vmatprep.subr.mxu0 0.0
  %258 = vmatpush1.msra.mxu0 0.0
  %259 = vmatprep.subr.mxu0 0.0
  %260 = vmatpush1.msra.mxu0 0.0
  %261 = vmatprep.subr.mxu0 0.0
  %262 = vmatpush1.msra.mxu0 0.0
  %263 = vmatprep.subr.mxu0 0.0
  %264 = vmatpush1.msra.mxu0 0.0
  %265 = vmatprep.subr.mxu0 0.0
  %266 = vmatpush1.msra.mxu0 %v236
  %267 = vmatprep.subr.mxu0 0.0
  %268 = vmatpush1.msra.mxu0 %v235
  %269 = vmatprep.subr.mxu0 0.0
  %270 = vmatpush2.msra.mxu0 0.0
  %271 = vmatprep.subr.mxu0 0.0
  %272 = vmatpush2.msra.mxu0 0.0
  %273 = vmatprep.subr.mxu0 0.0
  %274 = vmatpush2.msra.mxu0 0.0
  %275 = vmatprep.subr.mxu0 0.0
  %276 = vmatpush2.msra.mxu0 0.0
  %277 = vmatprep.subr.mxu0 0.0
  %278 = vmatpush2.msra.mxu0 0.0
  %279 = vmatprep.subr.mxu0 0.0
  %280 = vmatpush2.msra.mxu0 0.0
  %281 = vmatprep.subr.mxu0 0.0
  %282 = vmatpush2.msra.mxu0 0.0
  %283 = vmatprep.subr.mxu0 0.0
  %284 = vmatpush2.msra.mxu0 0.0
  %285 = vmatprep.subr.mxu0 0.0
  %286 = vmatpush2.msra.mxu0 0.0
  %287 = vmatprep.subr.mxu0 0.0
  %288 = vmatpush2.msra.mxu0 0.0
  %289 = vmatprep.subr.mxu0 0.0
  %290 = vmatpush2.msra.mxu0 0.0
  %291 = vmatprep.subr.mxu0 0.0
  %292 = vmatpush2.msra.mxu0 0.0
  %293 = vmatprep.subr.mxu0 0.0
  %294 = vmatpush2.msra.mxu0 0.0
  %295 = vmatprep.subr.mxu0 0.0
  %296 = vmatpush2.msra.mxu0 0.0
  %297 = vmatprep.subr.mxu0 0.0
  %298 = vmatpush2.msra.mxu0 0.0
  %299 = vmatprep.subr.mxu0 0.0
  %300 = vmatpush2.msra.mxu0 0.0
  %301 = vmatprep.mubr.f32.mxu0 0.0
  %302 = vmatmul.mubr.f32.gmra.mxu0 %v65
  %v303 = vpop.f32.mrf.mxu0
  %v304 = vadd.f32 0.0, %v303
  %v305 = vpop.f32.mrf.mxu0
  %306 = vmatprep.mubr.f32.mxu0 0.0
  %307 = vmatmul.mubr.f32.gmra.mxu0 %v68
  %v308 = vpop.f32.mrf.mxu0
  %v309 = vadd.f32 0.0, %v308
  %v310 = vpop.f32.mrf.mxu0
  %311 = vdwg.mxu0
  %vm312 = vcmask 523264
  %v314 = vsel %vm312, %v304, 0
  %v317 = vsel %vm312, %v309, 0
  %319 = vmatprep.subr.mxu0 0.0
  %320 = vmatpush1.msra.mxu0 0.0
  %321 = vmatprep.subr.mxu0 0.0
  %322 = vmatpush1.msra.mxu0 0.0
  %323 = vmatprep.subr.mxu0 0.0
  %324 = vmatpush1.msra.mxu0 0.0
  %325 = vmatprep.subr.mxu0 0.0
  %326 = vmatpush1.msra.mxu0 0.0
  %327 = vmatprep.subr.mxu0 0.0
  %328 = vmatpush1.msra.mxu0 0.0
  %329 = vmatprep.subr.mxu0 0.0
  %330 = vmatpush1.msra.mxu0 0.0
  %331 = vmatprep.subr.mxu0 0.0
  %332 = vmatpush1.msra.mxu0 0.0
  %333 = vmatprep.subr.mxu0 0.0
  %334 = vmatpush1.msra.mxu0 0.0
  %335 = vmatprep.subr.mxu0 0.0
  %336 = vmatpush1.msra.mxu0 %v54
  %337 = vmatprep.subr.mxu0 0.0
  %338 = vmatpush1.msra.mxu0 %v53
  %339 = vmatprep.subr.mxu0 0.0
  %340 = vmatpush1.msra.mxu0 %v52
  %341 = vmatprep.subr.mxu0 0.0
  %342 = vmatpush1.msra.mxu0 %v51
  %343 = vmatprep.subr.mxu0 0.0
  %344 = vmatpush1.msra.mxu0 %v50
  %345 = vmatprep.subr.mxu0 0.0
  %346 = vmatpush1.msra.mxu0 %v49
  %347 = vmatprep.subr.mxu0 0.0
  %348 = vmatpush1.msra.mxu0 %v48
  %349 = vmatprep.subr.mxu0 0.0
  %350 = vmatpush1.msra.mxu0 %v47
  %351 = vmatprep.subr.mxu0 0.0
  %352 = vmatpush2.msra.mxu0 0.0
  %353 = vmatprep.subr.mxu0 0.0
  %354 = vmatpush2.msra.mxu0 0.0
  %355 = vmatprep.subr.mxu0 0.0
  %356 = vmatpush2.msra.mxu0 0.0
  %357 = vmatprep.subr.mxu0 0.0
  %358 = vmatpush2.msra.mxu0 0.0
  %359 = vmatprep.subr.mxu0 0.0
  %360 = vmatpush2.msra.mxu0 0.0
  %361 = vmatprep.subr.mxu0 0.0
  %362 = vmatpush2.msra.mxu0 0.0
  %363 = vmatprep.subr.mxu0 0.0
  %364 = vmatpush2.msra.mxu0 0.0
  %365 = vmatprep.subr.mxu0 0.0
  %366 = vmatpush2.msra.mxu0 0.0
  %367 = vmatprep.subr.mxu0 0.0
  %368 = vmatpush2.msra.mxu0 0.0
  %369 = vmatprep.subr.mxu0 0.0
  %370 = vmatpush2.msra.mxu0 0.0
  %371 = vmatprep.subr.mxu0 0.0
  %372 = vmatpush2.msra.mxu0 0.0
  %373 = vmatprep.subr.mxu0 0.0
  %374 = vmatpush2.msra.mxu0 0.0
  %375 = vmatprep.subr.mxu0 0.0
  %376 = vmatpush2.msra.mxu0 0.0
  %377 = vmatprep.subr.mxu0 0.0
  %378 = vmatpush2.msra.mxu0 0.0
  %379 = vmatprep.subr.mxu0 0.0
  %380 = vmatpush2.msra.mxu0 0.0
  %381 = vmatprep.subr.mxu0 0.0
  %382 = vmatpush2.msra.mxu0 0.0
  %383 = vmatprep.mubr.f32.mxu0 0.0
  %384 = vmatmul.mubr.f32.gmra.mxu0 %v314
  %v385 = vpop.f32.mrf.mxu0
  %v386 = vadd.f32 0.0, %v385
  %v387 = vpop.f32.mrf.mxu0
  %388 = vmatprep.mubr.f32.mxu0 0.0
  %389 = vmatmul.mubr.f32.gmra.mxu0 %v317
  %v390 = vpop.f32.mrf.mxu0
  %v391 = vadd.f32 0.0, %v390
  %v392 = vpop.f32.mrf.mxu0
  %393 = vdwg.mxu0
  %v394 = vmul.f32 %v39, %v386
  %v395 = vmul.f32 %v40, %v391
  %v396 = vlaneseq
  %v397 = vshrl.u32 %v396, 7
  %v398 = vsub.s32 1, %v397
  %v399 = vrot.slane %v63, %v398
  %v400 = vadd.f32 %v394, %v399
  %v401 = vadd.f32 %v395, %v399
  %v402 = vsel %vm145, %v400, 0.0
  %403 = vadd.xlane.f32.xlu0 %v402
  %v404 = vpop.xlane.xlu0 %403
  %v405 = vsel %vm145, %v401, 0.0
  %406 = vadd.xlane.f32.xlu0 %v405
  %v407 = vpop.xlane.xlu0 %406
  %v408 = vrcp.pop 32.0
  %v409 = vmul.f32 %v404, %v408
  %v410 = vmul.f32 %v407, %v408
  %v411 = vsub.f32 %v400, %v409
  %v412 = vsub.f32 %v401, %v410
  %v413 = vmul.f32 %v411, %v411
  %v414 = vmul.f32 %v412, %v412
  %v415 = vsel %vm145, %v413, 0.0
  %416 = vadd.xlane.f32.xlu0 %v415
  %v417 = vpop.xlane.xlu0 %416
  %v418 = vsel %vm145, %v414, 0.0
  %419 = vadd.xlane.f32.xlu0 %v418
  %v420 = vpop.xlane.xlu0 %419
  %v421 = vmul.f32 %v417, %v408
  %v422 = vmul.f32 %v420, %v408
  %v423 = vadd.f32 %v421, 1e-05
  %v424 = vadd.f32 %v422, 1e-05
  %v425 = vrsqrt.pop %v423
  %v426 = vrsqrt.pop %v424
  %v427 = vmul.f32 %v411, %v425
  %v428 = vmul.f32 %v412, %v426
  %v429 = vlaneseq
  %v430 = vshrl.u32 %v429, 7
  %v431 = vsub.s32 2, %v430
  %v432 = vrot.slane %v63, %v431
  %v433 = vmul.f32 %v427, %v432
  %v434 = vmul.f32 %v428, %v432
  %v435 = vlaneseq
  %v436 = vshrl.u32 %v435, 7
  %v437 = vsub.s32 3, %v436
  %v438 = vrot.slane %v63, %v437
  %v439 = vadd.f32 %v433, %v438
  %v440 = vadd.f32 %v434, %v438
  %v441 = vadd.f32 %v17, %v439
  %v442 = vadd.f32 %v18, %v440
  %v443 = vlaneseq
  %v444 = vshrl.u32 %v443, 7
  %v445 = vsub.s32 4, %v444
  %v446 = vrot.slane %v63, %v445
  %v448 = vsel %vm145, %v441, 0
  %v451 = vsel %vm145, %v442, 0
  %453 = vmatprep.subr.mxu0 0.0
  %454 = vmatpush1.msra.mxu0 0.0
  %455 = vmatprep.subr.mxu0 0.0
  %456 = vmatpush1.msra.mxu0 0.0
  %457 = vmatprep.subr.mxu0 0.0
  %458 = vmatpush1.msra.mxu0 0.0
  %459 = vmatprep.subr.mxu0 0.0
  %460 = vmatpush1.msra.mxu0 0.0
  %461 = vmatprep.subr.mxu0 0.0
  %462 = vmatpush1.msra.mxu0 0.0
  %463 = vmatprep.subr.mxu0 0.0
  %464 = vmatpush1.msra.mxu0 0.0
  %465 = vmatprep.subr.mxu0 0.0
  %466 = vmatpush1.msra.mxu0 0.0
  %467 = vmatprep.subr.mxu0 0.0
  %468 = vmatpush1.msra.mxu0 0.0
  %469 = vmatprep.subr.mxu0 0.0
  %470 = vmatpush1.msra.mxu0 0.0
  %471 = vmatprep.subr.mxu0 0.0
  %472 = vmatpush1.msra.mxu0 0.0
  %473 = vmatprep.subr.mxu0 0.0
  %474 = vmatpush1.msra.mxu0 0.0
  %475 = vmatprep.subr.mxu0 0.0
  %476 = vmatpush1.msra.mxu0 0.0
  %477 = vmatprep.subr.mxu0 0.0
  %478 = vmatpush1.msra.mxu0 %v58
  %479 = vmatprep.subr.mxu0 0.0
  %480 = vmatpush1.msra.mxu0 %v57
  %481 = vmatprep.subr.mxu0 0.0
  %482 = vmatpush1.msra.mxu0 %v56
  %483 = vmatprep.subr.mxu0 0.0
  %484 = vmatpush1.msra.mxu0 %v55
  %485 = vmatprep.subr.mxu0 0.0
  %486 = vmatpush2.msra.mxu0 0.0
  %487 = vmatprep.subr.mxu0 0.0
  %488 = vmatpush2.msra.mxu0 0.0
  %489 = vmatprep.subr.mxu0 0.0
  %490 = vmatpush2.msra.mxu0 0.0
  %491 = vmatprep.subr.mxu0 0.0
  %492 = vmatpush2.msra.mxu0 0.0
  %493 = vmatprep.subr.mxu0 0.0
  %494 = vmatpush2.msra.mxu0 0.0
  %495 = vmatprep.subr.mxu0 0.0
  %496 = vmatpush2.msra.mxu0 0.0
  %497 = vmatprep.subr.mxu0 0.0
  %498 = vmatpush2.msra.mxu0 0.0
  %499 = vmatprep.subr.mxu0 0.0
  %500 = vmatpush2.msra.mxu0 0.0
  %501 = vmatprep.subr.mxu0 0.0
  %502 = vmatpush2.msra.mxu0 0.0
  %503 = vmatprep.subr.mxu0 0.0
  %504 = vmatpush2.msra.mxu0 0.0
  %505 = vmatprep.subr.mxu0 0.0
  %506 = vmatpush2.msra.mxu0 0.0
  %507 = vmatprep.subr.mxu0 0.0
  %508 = vmatpush2.msra.mxu0 0.0
  %509 = vmatprep.subr.mxu0 0.0
  %510 = vmatpush2.msra.mxu0 0.0
  %511 = vmatprep.subr.mxu0 0.0
  %512 = vmatpush2.msra.mxu0 0.0
  %513 = vmatprep.subr.mxu0 0.0
  %514 = vmatpush2.msra.mxu0 0.0
  %515 = vmatprep.subr.mxu0 0.0
  %516 = vmatpush2.msra.mxu0 0.0
  %517 = vmatprep.mubr.f32.mxu0 0.0
  %518 = vmatmul.mubr.f32.gmra.mxu0 %v448
  %v519 = vpop.f32.mrf.mxu0
  %v520 = vadd.f32 %v446, %v519
  %v521 = vpop.f32.mrf.mxu0
  %522 = vmatprep.mubr.f32.mxu0 0.0
  %523 = vmatmul.mubr.f32.gmra.mxu0 %v451
  %v524 = vpop.f32.mrf.mxu0
  %v525 = vadd.f32 %v446, %v524
  %v526 = vpop.f32.mrf.mxu0
  %527 = vdwg.mxu0
  %v528 = vmax.f32 %v520, 0.0
  %v529 = vmax.f32 %v525, 0.0
  %v530 = vlaneseq
  %v531 = vshrl.u32 %v530, 7
  %v532 = vsub.s32 5, %v531
  %v533 = vrot.slane %v63, %v532
  %v535 = vsel %vm145, %v528, 0
  %v538 = vsel %vm145, %v529, 0
  %540 = vmatprep.subr.mxu0 0.0
  %541 = vmatpush1.msra.mxu0 0.0
  %542 = vmatprep.subr.mxu0 0.0
  %543 = vmatpush1.msra.mxu0 0.0
  %544 = vmatprep.subr.mxu0 0.0
  %545 = vmatpush1.msra.mxu0 0.0
  %546 = vmatprep.subr.mxu0 0.0
  %547 = vmatpush1.msra.mxu0 0.0
  %548 = vmatprep.subr.mxu0 0.0
  %549 = vmatpush1.msra.mxu0 0.0
  %550 = vmatprep.subr.mxu0 0.0
  %551 = vmatpush1.msra.mxu0 0.0
  %552 = vmatprep.subr.mxu0 0.0
  %553 = vmatpush1.msra.mxu0 0.0
  %554 = vmatprep.subr.mxu0 0.0
  %555 = vmatpush1.msra.mxu0 0.0
  %556 = vmatprep.subr.mxu0 0.0
  %557 = vmatpush1.msra.mxu0 0.0
  %558 = vmatprep.subr.mxu0 0.0
  %559 = vmatpush1.msra.mxu0 0.0
  %560 = vmatprep.subr.mxu0 0.0
  %561 = vmatpush1.msra.mxu0 0.0
  %562 = vmatprep.subr.mxu0 0.0
  %563 = vmatpush1.msra.mxu0 0.0
  %564 = vmatprep.subr.mxu0 0.0
  %565 = vmatpush1.msra.mxu0 %v62
  %566 = vmatprep.subr.mxu0 0.0
  %567 = vmatpush1.msra.mxu0 %v61
  %568 = vmatprep.subr.mxu0 0.0
  %569 = vmatpush1.msra.mxu0 %v60
  %570 = vmatprep.subr.mxu0 0.0
  %571 = vmatpush1.msra.mxu0 %v59
  %572 = vmatprep.subr.mxu0 0.0
  %573 = vmatpush2.msra.mxu0 0.0
  %574 = vmatprep.subr.mxu0 0.0
  %575 = vmatpush2.msra.mxu0 0.0
  %576 = vmatprep.subr.mxu0 0.0
  %577 = vmatpush2.msra.mxu0 0.0
  %578 = vmatprep.subr.mxu0 0.0
  %579 = vmatpush2.msra.mxu0 0.0
  %580 = vmatprep.subr.mxu0 0.0
  %581 = vmatpush2.msra.mxu0 0.0
  %582 = vmatprep.subr.mxu0 0.0
  %583 = vmatpush2.msra.mxu0 0.0
  %584 = vmatprep.subr.mxu0 0.0
  %585 = vmatpush2.msra.mxu0 0.0
  %586 = vmatprep.subr.mxu0 0.0
  %587 = vmatpush2.msra.mxu0 0.0
  %588 = vmatprep.subr.mxu0 0.0
  %589 = vmatpush2.msra.mxu0 0.0
  %590 = vmatprep.subr.mxu0 0.0
  %591 = vmatpush2.msra.mxu0 0.0
  %592 = vmatprep.subr.mxu0 0.0
  %593 = vmatpush2.msra.mxu0 0.0
  %594 = vmatprep.subr.mxu0 0.0
  %595 = vmatpush2.msra.mxu0 0.0
  %596 = vmatprep.subr.mxu0 0.0
  %597 = vmatpush2.msra.mxu0 0.0
  %598 = vmatprep.subr.mxu0 0.0
  %599 = vmatpush2.msra.mxu0 0.0
  %600 = vmatprep.subr.mxu0 0.0
  %601 = vmatpush2.msra.mxu0 0.0
  %602 = vmatprep.subr.mxu0 0.0
  %603 = vmatpush2.msra.mxu0 0.0
  %604 = vmatprep.mubr.f32.mxu0 0.0
  %605 = vmatmul.mubr.f32.gmra.mxu0 %v535
  %v606 = vpop.f32.mrf.mxu0
  %v607 = vadd.f32 %v533, %v606
  %v608 = vpop.f32.mrf.mxu0
  %609 = vmatprep.mubr.f32.mxu0 0.0
  %610 = vmatmul.mubr.f32.gmra.mxu0 %v538
  %v611 = vpop.f32.mrf.mxu0
  %v612 = vadd.f32 %v533, %v611
  %v613 = vpop.f32.mrf.mxu0
  %614 = vdwg.mxu0
  %v615 = vadd.f32 %v441, %v607
  %v616 = vadd.f32 %v442, %v612
  %617 = vst.msk [vmem:[%s4] sm:$0xff] %vm145, %v615
  %618 = vst.msk [vmem:[%s4 + $0x8] sm:$0xff] %vm145, %v616
  // Predicated region
  $region18: #{_encoder_jit.1} parent=0 // pred_check
    _
  $region19: #{_encoder_jit.1} parent=0 // pred_check_branch
    %620 = sbr.rel (0) target = $region21
  $region20: #{_encoder_jit.1} parent=0 // pred_region
    _
  $region21: #{_encoder_jit.1} parent=0 // pred_fallthru
    _
  // Predicated region
  $region22: #{_encoder_jit.1} parent=0 // pred_check
    _
  $region23: #{_encoder_jit.1} parent=0 // pred_check_branch
    %622 = sbr.rel (0) target = $region25
  $region24: #{_encoder_jit.1} parent=0 // pred_region
    _
  $region25: #{_encoder_jit.1} parent=0 // pred_fallthru
    _

</llo_original>
